<compile_context>
chip_gen: v7x
topology: tpu7x:2x2x1
jax: 0.10.0
libtpu: 0.0.40
codegen_flags: <defaults>
</compile_context>

<pallas_src>
import functools

import jax
import jax.numpy as jnp
import numpy as np
from jax.experimental import pallas as pl
from jax.experimental.pallas import tpu as pltpu

IGNORE_ID = -1   # caption fill value used by the reference module
LANE = 128       # TPU lane width
SUBLANE = 8      # TPU sublane count (f32)
MAX_TILE_C = 2048  # chunks per block -> 2048*128*4B = 1 MiB per f32 buffer


# --------------------------------------------------------------------------
# Pallas kernel: gather rows by a prefetched permutation + mask-pad past the
# (gathered) row's valid length. Purely memory-bound load/select/store.
# --------------------------------------------------------------------------
def _pad_gather_kernel(fill_value, tile_c, idx_ref, lens_ref, x_ref, out_ref):
    """Output block (b, t): source row idx[b] (selected by the index_map),
    keep flat positions < lens[idx[b]], fill the rest with fill_value."""
    b = pl.program_id(0)
    t = pl.program_id(1)
    src = idx_ref[b]          # scalar from SMEM (prefetched permutation)
    n = lens_ref[src]         # valid length of the gathered source row

    lane = out_ref.shape[-1]
    base = t * (tile_c * lane)
    sub = jax.lax.broadcasted_iota(jnp.int32, (1, tile_c, lane), 1)
    ln = jax.lax.broadcasted_iota(jnp.int32, (1, tile_c, lane), 2)
    pos = base + sub * lane + ln            # flat time/token position

    x = x_ref[...]
    fill = jnp.asarray(fill_value, dtype=x.dtype)   # scalar, no full_like
    out_ref[...] = jnp.where(pos < n, x, fill)


def pad_and_gather(x, lens, indices, fill_value, tile_c):
    """x: [B, C, 128] chunk-packed buffer (garbage beyond each row's length),
    lens: [B] int32 valid lengths (in elements), indices: [B] int32 gather
    permutation. Returns [B, C, 128] with row b == mask_fill(x[indices[b]])."""
    B, C, lane = x.shape
    assert lane == LANE and C % tile_c == 0 and tile_c % SUBLANE == 0
    kernel = functools.partial(_pad_gather_kernel, fill_value, tile_c)
    return pl.pallas_call(
        kernel,
        out_shape=jax.ShapeDtypeStruct((B, C, lane), x.dtype),
        grid_spec=pltpu.PrefetchScalarGridSpec(
            num_scalar_prefetch=2,          # indices, lens -> SMEM
            grid=(B, C // tile_c),
            in_specs=[
                # data-dependent row gather: block index from prefetched perm
                pl.BlockSpec((1, tile_c, lane),
                             lambda b, t, idx, lens: (idx[b], t, 0)),
            ],
            out_specs=pl.BlockSpec((1, tile_c, lane),
                                   lambda b, t, idx, lens: (b, t, 0)),
        ),
        compiler_params=pltpu.CompilerParams(
            dimension_semantics=("parallel", "parallel")),
    )(indices, lens, x)


# --------------------------------------------------------------------------
# Host-side glue
# --------------------------------------------------------------------------
def _select_caption_indices(key, captions_list):
    """Deterministic 'random' caption selection, one vectorized randint
    (single host sync) instead of B device round-trips."""
    n_caps = jnp.asarray([len(c) for c in captions_list], jnp.int32)
    sel = jax.random.randint(key, (len(captions_list),), 0, n_caps)
    return np.asarray(sel)


def _pack_audio(audios_list):
    """Chunk-pack ragged audio into [B, C, 128] (C a multiple of the tile)."""
    B = len(audios_list)
    lens = np.asarray([a.shape[-1] for a in audios_list], np.int32)
    T = int(lens.max())
    C = -(-T // LANE)                       # cdiv to lane chunks
    C = -(-C // SUBLANE) * SUBLANE          # sublane-dense (multiple of 8)
    tile_c = min(C, MAX_TILE_C)
    C = -(-C // tile_c) * tile_c            # whole number of T-tiles
    buf = np.full((B, C * LANE), 999.0, np.float32)   # garbage beyond length
    for i, a in enumerate(audios_list):
        buf[i, : a.shape[-1]] = np.asarray(a, np.float32)
    return buf.reshape(B, C, LANE), lens, T, tile_c


def pad_collate(audios_list, captions_list, key,
                caption_fill=IGNORE_ID, audio_fill=0.0):
    """JAX/Pallas equivalent of PadCollate.forward with
    has_multiple_captions=True, captions_select='random', sort_batch=True."""
    B = len(audios_list)

    # ---- audio packing (host glue) ----
    audio_buf, audio_lens, T, tile_c = _pack_audio(audios_list)
    audio_lens_j = jnp.asarray(audio_lens)

    # ---- caption selection ('random', deterministic, one randint) ----
    sel_idx = _select_caption_indices(key, captions_list)
    sel_captions = [caps[int(i)] for caps, i in zip(captions_list, sel_idx)]
    cap_lens = np.asarray([len(c) for c in sel_captions], np.int32)
    L = int(cap_lens.max())
    cap_buf = np.full((B, L), 7777, np.int32)
    for i, c in enumerate(sel_captions):
        cap_buf[i, : len(c)] = np.asarray(c, np.int32)
    cap_lens_j = jnp.asarray(cap_lens)

    # ---- sort by descending audio length ----
    indices = jnp.argsort(-audio_lens_j).astype(jnp.int32)

    # ---- Pallas hot path: audio mask-pad + gather (memory-bound) ----
    audios_full = pad_and_gather(jnp.asarray(audio_buf), audio_lens_j, indices,
                                 float(audio_fill), tile_c)
    audios_pad = audios_full.reshape(B, -1)[:, :T]

    # ---- caption path: tiny (L ~ tens of tokens), plain jnp beats a launch ----
    pos = jnp.arange(L, dtype=jnp.int32)[None, :]
    caps_masked = jnp.where(pos < cap_lens_j[:, None], jnp.asarray(cap_buf),
                            jnp.int32(caption_fill))
    caps_pad = jnp.take(caps_masked, indices, axis=0)

    audio_lens_sorted = audio_lens_j[indices]
    cap_lens_sorted = cap_lens_j[indices]
    return audios_pad, audio_lens_sorted, caps_pad, cap_lens_sorted, indices


# --------------------------------------------------------------------------
# Pure-numpy reference mirroring the PyTorch semantics
# --------------------------------------------------------------------------
def _reference(audios_list, sel_captions, indices, T, L):
    B = len(audios_list)
    a_ref = np.zeros((B, T), np.float32)
    for i, a in enumerate(audios_list):
        a_ref[i, : a.shape[-1]] = np.asarray(a, np.float32)
    c_ref = np.full((B, L), IGNORE_ID, np.int32)
    for i, c in enumerate(sel_captions):
        c_ref[i, : len(c)] = np.asarray(c, np.int32)
    idx = np.asarray(indices)
    return a_ref[idx], c_ref[idx]


if __name__ == "__main__":
    key = jax.random.PRNGKey(0)

    # small synthetic batch: 4 samples, ragged audio, ragged candidate captions
    B = 4
    audio_lens = [96, 200, 64, 150]          # max length not a multiple of 128
    audios_list = []
    for n in audio_lens:
        key, sub = jax.random.split(key)
        audios_list.append(jax.random.normal(sub, (n,), jnp.float32))

    captions_list = [
        [[1, 2, 3, 4, 5], [6, 7, 8]],
        [[9, 10, 11, 12, 13, 14, 15, 16], [17, 18]],
        [[19, 20, 21]],
        [[22, 23, 24, 25, 26, 27], [28, 29, 30, 31]],
    ]

    sel_key = jax.random.PRNGKey(0)
    audios_pad, a_lens, caps_pad, c_lens, indices = pad_collate(
        audios_list, captions_list, sel_key)
    jax.block_until_ready((audios_pad, a_lens, caps_pad, c_lens, indices))

    # reproduce the deterministic 'random' caption selection for the reference
    sel_idx = _select_caption_indices(sel_key, captions_list)
    sel_captions = [caps[int(i)] for caps, i in zip(captions_list, sel_idx)]

    T = max(audio_lens)
    L = max(len(c) for c in sel_captions)
    a_ref, c_ref = _reference(audios_list, sel_captions, indices, T, L)

    np.testing.assert_allclose(np.asarray(audios_pad), a_ref, rtol=1e-6, atol=1e-6)
    np.testing.assert_array_equal(np.asarray(caps_pad), c_ref)
    np.testing.assert_array_equal(
        np.asarray(a_lens), np.asarray(sorted(audio_lens, reverse=True)))
    np.testing.assert_array_equal(
        np.asarray(c_lens),
        np.asarray([len(sel_captions[int(i)]) for i in np.asarray(indices)]))

    print("KERNEL_OK")
</pallas_src>

<mosaic_0001>
module attributes {stable_mosaic.version = 11 : i64} {
  func.func @_pad_gather_kernel(%arg0: i32, %arg1: i32, %arg2: memref<4xi32, #tpu.memory_space<smem>>, %arg3: memref<4xi32, #tpu.memory_space<smem>>, %arg4: memref<1x8x128xf32, #tpu.memory_space<vmem>>, %arg5: memref<1x8x128xf32, #tpu.memory_space<vmem>>) attributes {dimension_semantics = [#tpu.dimension_semantics<parallel>, #tpu.dimension_semantics<parallel>], iteration_bounds = array<i64: 4, 1>, scalar_prefetch = 2 : i64, scratch_operands = 0 : i64, tpu.core_type = #tpu.core_type<tc>, window_params = [{transform_indices = @transform_0, window_bounds = array<i64: 1, 8, 128>}, {transform_indices = @transform_1, window_bounds = array<i64: 1, 8, 128>}]} {
    %0 = arith.index_cast %arg0 : i32 to index
    %1 = memref.load %arg2[%0] : memref<4xi32, #tpu.memory_space<smem>>
    %2 = arith.index_cast %1 : i32 to index
    %3 = memref.load %arg3[%2] : memref<4xi32, #tpu.memory_space<smem>>
    %c1024_i32 = arith.constant 1024 : i32
    %4 = arith.muli %arg1, %c1024_i32 : i32
    %5 = tpu.iota {dimensions = array<i32: 1>} : vector<1x8x128xi32>
    %6 = tpu.iota {dimensions = array<i32: 2>} : vector<1x8x128xi32>
    %c128_i32 = arith.constant 128 : i32
    %7 = vector.broadcast %c128_i32 : i32 to vector<1x8x128xi32>
    %8 = arith.muli %5, %7 : vector<1x8x128xi32>
    %9 = vector.broadcast %4 : i32 to vector<1x8x128xi32>
    %10 = arith.addi %9, %8 : vector<1x8x128xi32>
    %11 = arith.addi %10, %6 : vector<1x8x128xi32>
    %c0 = arith.constant 0 : index
    %c0_0 = arith.constant 0 : index
    %c0_1 = arith.constant 0 : index
    %12 = vector.load %arg4[%c0, %c0_0, %c0_1] : memref<1x8x128xf32, #tpu.memory_space<vmem>>, vector<1x8x128xf32>
    %13 = vector.broadcast %3 : i32 to vector<1x8x128xi32>
    %14 = arith.cmpi slt, %11, %13 : vector<1x8x128xi32>
    %cst = arith.constant 0.000000e+00 : f32
    %15 = vector.broadcast %cst : f32 to vector<1x8x128xf32>
    %16 = arith.select %14, %12, %15 : vector<1x8x128xi1>, vector<1x8x128xf32>
    %c0_2 = arith.constant 0 : index
    %c0_3 = arith.constant 0 : index
    %c0_4 = arith.constant 0 : index
    %17 = vector.load %arg5[%c0_2, %c0_3, %c0_4] : memref<1x8x128xf32, #tpu.memory_space<vmem>>, vector<1x8x128xf32>
    tpu.vector_store %arg5[%c0_2, %c0_3, %c0_4], %16 {strides = array<i32>} : memref<1x8x128xf32, #tpu.memory_space<vmem>>, vector<1x8x128xf32>,
    return
  }
  func.func @transform_0(%arg0: i32, %arg1: i32, %arg2: memref<4xi32, #tpu.memory_space<smem>>, %arg3: memref<4xi32, #tpu.memory_space<smem>>) -> (i32, i32, i32) {
    %0 = arith.index_cast %arg0 : i32 to index
    %1 = memref.load %arg2[%0] : memref<4xi32, #tpu.memory_space<smem>>
    %c0_i32 = arith.constant 0 : i32
    %c0_i32_0 = arith.constant 0 : i32
    return %1, %arg1, %c0_i32 : i32, i32, i32
  }
  func.func @transform_1(%arg0: i32, %arg1: i32, %arg2: memref<4xi32, #tpu.memory_space<smem>>, %arg3: memref<4xi32, #tpu.memory_space<smem>>) -> (i32, i32, i32) {
    %c0_i32 = arith.constant 0 : i32
    %c0_i32_0 = arith.constant 0 : i32
    return %arg0, %arg1, %c0_i32 : i32, i32, i32
  }
}

</mosaic_0001>

<llo_original>
// kernel: tpu_custom_call.1
$region0: #{tpu_custom_call.1}
  #allocation0 [shape = 'u32[]', space=smem, size = 0x4, offset = 0x4, fixed_abs, tag = 'smem constant byte address 0x4 - core index']
  #allocation1 [shape = 'u32[144,128]{1,0:T(1,128)}', space=vmem, size = 0x12000, scoped, tag = 'internal scratch']
  #allocation2 [shape = 's32[1]{0}', space=sflag, size = 0x4, scoped, tag = 'scoped memory for tpu_custom_call.1']
  #allocation3 [shape = 'u8[512]{0}', space=smem, size = 0x200, scoped, tag = 'prefetched SMEM operand 0']
  #allocation4 [shape = 'u8[512]{0}', space=smem, size = 0x200, scoped, tag = 'prefetched SMEM operand 1']
  %s0 = inlined_call_operand.hbm [shape: s32[4], index: 0, kind: input, shape index: {}]
  %s1 = inlined_call_operand.vmem [shape: s32[4], index: 1, kind: input, shape index: {}]
  %s2 = inlined_call_operand.hbm [shape: f32[4,8,128], index: 2, kind: input, shape index: {}]
  %s3 = inlined_call_operand.hbm [shape: f32[4,8,128], index: 3, kind: output, shape index: {}]
  %s4 = sld [smem:[#allocation0]]
  $region41: #{tpu_custom_call.1} parent=0
    _
  %s6 = ssub.s32 1, %s4
  %s7 = scalar_select 0, %s6, %s4
  %9 = dma.hbm_to_smem %s0, 16, [#allocation3], [#allocation2]
  %s10 = sshll.u32 %s1, 4
  %s11 = int_to_ptr.vmem [resolvable:$true] %s10
  %13 = dma.vmem_to_smem %s11, 16, [#allocation4], [#allocation2]
  %14 = dma.done [#allocation2], 32
  %15 = sfence
  $region1: #{tpu_custom_call.1} parent=0
    #allocation5 [shape = 'u8[8192]{0}', space=vmem, size = 0x2000, scoped, tag = 'input window, operand 2']
    #allocation6 [shape = 's32[2]{0}', space=sflag, size = 0x8, scoped, tag = 'scoped memory for tpu_custom_call.1']
    #allocation7 [shape = 's32[2]{0}', space=sflag, size = 0x8, scoped, tag = 'scoped memory for tpu_custom_call.1']
    #allocation8 [shape = 'u8[8192]{0}', space=vmem, size = 0x2000, scoped, tag = 'output window, operand 0']
    %16 = vsyncpa [#allocation6], 0
    %s17 = scalar_lea.sflag [#allocation6], 1
    %18 = vsyncpa %s17, 0
    %19 = vsyncpa [#allocation7], 0
    %s20 = scalar_lea.sflag [#allocation7], 1
    %21 = vsyncpa %s20, 0
    loop: start=0, step=1, limit=6
    $region2: #{tpu_custom_call.1} parent=1 // loop_pre_header
      _
    $region3: #{tpu_custom_call.1} parent=1 // loop_header
      %s23 = sphi 0, %s27
      %p24 = scmp.ge.s32.totalorder %s23, 6
      %s30 = sphi 0, %s42
      %s31 = sphi 0, %s38
      %s32 = sphi 0, %s30
      %s33 = sphi 0, %s31
      %s34 = sphi 0, %s32
      %s35 = sphi 0, %s33
      %s49 = sphi 0, %s51
      %s52 = sphi 0, %s49
      %s53 = sphi 0, %s52
      %s69 = sphi 0, %s53
      %s77 = sphi 0, %s79
      %s80 = sphi 0, %s77
      %s81 = sphi 0, %s80
      %s97 = sphi 0, %s81
    $region4: #{tpu_custom_call.1} parent=1 // loop_header_branch
      %26 = sbr.rel (%p24) target = $region8
    $region5: #{tpu_custom_call.1} parent=1 // loop_body
      %s28 = ssub.s32 %s23, 1
      %s29 = ssub.s32 %s23, 2
      %s36 = sadd.s32 1, %s31
      %p37 = scmp.ge.s32.totalorder %s36, 1
      %s38 = scalar_select %p37, 0, %s36
      %s39 = sadd.s32 1, %s30
      %s40 = scalar_select %p37, %s39, %s30
      %p41 = scmp.ge.s32.totalorder %s40, 4
      %s42 = scalar_select %p41, 0, %s40
      %s43 = sld [smem:[#allocation3 + %s30]]
      %s44 = sld [smem:[#allocation3 + %s42]]
      %s45 = ssub.s32 %s43, %s44
      %s46 = ssub.s32 %s31, %s38
      %s47 = sor.u32 %s45, %s46
      %p48 = scmp.eq.s32.totalorder %s47, 0
      %s50 = sadd.s32 %s49, 1
      %s51 = scalar_select %p48, %s49, %s50
      %p54 = pneg %p48
      %p55 = scmp.eq.s32.totalorder %s23, 3
      %p56 = por %p54, %p55
      %p57 = scmp.ne.s32.totalorder %s49, %s52
      %p58 = scmp.eq.s32.totalorder %s23, 0
      %p59 = por %p57, %p58
      %p60 = scmp.ne.s32.totalorder %s49, %s52
      %p61 = scmp.eq.s32.totalorder %s28, 3
      %p62 = por %p60, %p61
      %p63 = scmp.ne.s32.totalorder %s52, %s53
      %p64 = scmp.eq.s32.totalorder %s28, 0
      %p65 = por %p63, %p64
      %p66 = scmp.ne.s32.totalorder %s52, %s53
      %p67 = scmp.eq.s32.totalorder %s29, 3
      %p68 = por %p66, %p67
      %p70 = scmp.ne.s32.totalorder %s53, %s69
      %p71 = scmp.eq.s32.totalorder %s29, 0
      %p72 = por %p70, %p71
      %s73 = ssub.s32 %s30, %s42
      %s74 = ssub.s32 %s31, %s38
      %s75 = sor.u32 %s73, %s74
      %p76 = scmp.eq.s32.totalorder %s75, 0
      %s78 = sadd.s32 %s77, 1
      %s79 = scalar_select %p76, %s77, %s78
      %p82 = pneg %p76
      %p83 = scmp.eq.s32.totalorder %s23, 3
      %p84 = por %p82, %p83
      %p85 = scmp.ne.s32.totalorder %s77, %s80
      %p86 = scmp.eq.s32.totalorder %s23, 0
      %p87 = por %p85, %p86
      %p88 = scmp.ne.s32.totalorder %s77, %s80
      %p89 = scmp.eq.s32.totalorder %s28, 3
      %p90 = por %p88, %p89
      %p91 = scmp.ne.s32.totalorder %s80, %s81
      %p92 = scmp.eq.s32.totalorder %s28, 0
      %p93 = por %p91, %p92
      %p94 = scmp.ne.s32.totalorder %s80, %s81
      %p95 = scmp.eq.s32.totalorder %s29, 3
      %p96 = por %p94, %p95
      %p98 = scmp.ne.s32.totalorder %s81, %s97
      %p99 = scmp.eq.s32.totalorder %s29, 0
      %p100 = por %p98, %p99
      %p101 = scmp.le.s32.totalorder 1, %s23
      %p102 = scmp.lt.s32.totalorder %s23, 5
      %p103 = pnand %p101, %p102
      %p104 = pneg %p103
      // Predicated region
      $region9: #{tpu_custom_call.1} parent=5 // pred_check
        _
      $region10: #{tpu_custom_call.1} parent=5 // pred_check_branch
        %106 = sbr.rel (%p103) target = $region12
      $region11: #{tpu_custom_call.1} parent=5 // pred_region
        %s107 = ssub.s32 %s23, 1
      $region12: #{tpu_custom_call.1} parent=5 // pred_fallthru
        _
      %p108 = scmp.lt.s32.totalorder %s23, 4
      // Predicated region
      $region13: #{tpu_custom_call.1} parent=5 // pred_check
        %p109 = pneg %p108
      $region14: #{tpu_custom_call.1} parent=5 // pred_check_branch
        %111 = sbr.rel (%p109) target = $region16
      $region15: #{tpu_custom_call.1} parent=5 // pred_region
        // Predicated region
        $region17: #{tpu_custom_call.1} parent=15 // pred_check
          %p112 = pneg %p59
        $region18: #{tpu_custom_call.1} parent=15 // pred_check_branch
          %114 = sbr.rel (%p112) target = $region20
        $region19: #{tpu_custom_call.1} parent=15 // pred_region
          %s115 = sand.u32 %s49, 1
          %s116 = scalar_lea.sflag [#allocation6], %s115
          %s117 = sand.u32 %s49, 1
          %s118 = smul.addr %s117, 8
          %s119 = scalar_lea.vmem [#allocation5], %s118
          %s120 = sld [smem:[#allocation3 + %s30]]
          %s122 = ssub.s32 128, 128
          %123 = vsyncadd %s116, %s122
          %s124 = sadd.s32 %s31, %s120
          %s125 = smul.addr %s124, 128
          %s126 = scalar_lea.hbm %s2, %s125
          %s128 = sshll.u32 %s119, 4
          %s129 = int_to_ptr.vmem [resolvable:$true] %s128
          %131 = dma.hbm_to_vmem [thread:$0]  %s126, 128, %s129, %s116
        $region20: #{tpu_custom_call.1} parent=15 // pred_fallthru
          _
      $region16: #{tpu_custom_call.1} parent=5 // pred_fallthru
        _
      %p132 = scmp.le.s32.totalorder 1, %s23
      %p133 = scmp.lt.s32.totalorder %s23, 5
      %p134 = pnand %p132, %p133
      %p135 = pneg %p134
      // Predicated region
      $region21: #{tpu_custom_call.1} parent=5 // pred_check
        _
      $region22: #{tpu_custom_call.1} parent=5 // pred_check_branch
        %137 = sbr.rel (%p134) target = $region24
      $region23: #{tpu_custom_call.1} parent=5 // pred_region
        %s138 = ssub.s32 %s23, 1
        %s139 = sand.u32 %s52, 1
        %s140 = scalar_lea.sflag [#allocation6], %s139
        %s141 = sand.u32 %s52, 1
        %s142 = smul.addr %s141, 8
        %s143 = scalar_lea.vmem [#allocation5], %s142
        // Predicated region
        $region25: #{tpu_custom_call.1} parent=23 // pred_check
          %p144 = pneg %p65
        $region26: #{tpu_custom_call.1} parent=23 // pred_check_branch
          %146 = sbr.rel (%p144) target = $region28
        $region27: #{tpu_custom_call.1} parent=23 // pred_region
          %147 = dma.done %s140, 128
        $region28: #{tpu_custom_call.1} parent=23 // pred_fallthru
          _
        %s148 = sand.u32 %s52, 1
        %s149 = scalar_lea.sflag [#allocation6], %s148
        %s150 = sand.u32 %s52, 1
        %s151 = smul.addr %s150, 8
        %s152 = scalar_lea.vmem [#allocation5], %s151
        %p153 = pneg %p65
        %p154 = pneg %p62
        %p155 = pneg %p93
        %p156 = pneg %p90
        %s157 = sand.u32 %s80, 1
        %s158 = scalar_lea.sflag [#allocation7], %s157
        %s159 = sand.u32 %s80, 1
        %s160 = smul.addr %s159, 8
        %s161 = scalar_lea.vmem [#allocation8], %s160
        %s162 = sld [smem:[#allocation3 + %s32]]
        %s163 = sld [smem:[#allocation3 + %s32]]
        %s164 = sld [smem:[#allocation4 + %s163]]
        %s165 = smul.u32 %s33, 1024
        %v166 = vlaneseq
        %v167 = vshrl.u32 %v166, 7
        %v168 = vlaneseq
        %v169 = vand.u32 %v168, 127
        %v170 = vmul.u32 %v167, 128
        %v171 = vstv %s165
        %v172 = vadd.s32 %v171, %v170
        %v173 = vadd.s32 %v172, %v169
        %v174 = vld [vmem:[%s143] sm:$0xff]
        %v175 = vstv %s164
        %vm176 = vcmp.lt.s32.totalorder %v173, %v175
        %v177 = vsel %vm176, %v174, 0.0
        %178 = vst [vmem:[%s161] sm:$0xff] %v177
        %s179 = sand.u32 %s80, 1
        %s180 = scalar_lea.sflag [#allocation7], %s179
        %s181 = sand.u32 %s80, 1
        %s182 = smul.addr %s181, 8
        %s183 = scalar_lea.vmem [#allocation8], %s182
        // Predicated region
        $region29: #{tpu_custom_call.1} parent=23 // pred_check
          %p184 = pneg %p90
        $region30: #{tpu_custom_call.1} parent=23 // pred_check_branch
          %186 = sbr.rel (%p184) target = $region32
        $region31: #{tpu_custom_call.1} parent=23 // pred_region
          %s188 = ssub.s32 128, 128
          %189 = vsyncadd %s180, %s188
          %s190 = sadd.s32 %s33, %s32
          %s191 = smul.addr %s190, 128
          %s192 = scalar_lea.hbm %s3, %s191
          %s194 = sshll.u32 %s183, 4
          %s195 = int_to_ptr.vmem [resolvable:$true] %s194
          %197 = dma.vmem_to_hbm [thread:$0]  %s195, 128, %s192, %s180
        $region32: #{tpu_custom_call.1} parent=23 // pred_fallthru
          _
      $region24: #{tpu_custom_call.1} parent=5 // pred_fallthru
        _
      %p198 = scmp.le.s32.totalorder 2, %s23
      // Predicated region
      $region33: #{tpu_custom_call.1} parent=5 // pred_check
        %p199 = pneg %p198
      $region34: #{tpu_custom_call.1} parent=5 // pred_check_branch
        %201 = sbr.rel (%p199) target = $region36
      $region35: #{tpu_custom_call.1} parent=5 // pred_region
        %s202 = ssub.s32 %s23, 2
        // Predicated region
        $region37: #{tpu_custom_call.1} parent=35 // pred_check
          %p203 = pneg %p96
        $region38: #{tpu_custom_call.1} parent=35 // pred_check_branch
          %205 = sbr.rel (%p203) target = $region40
        $region39: #{tpu_custom_call.1} parent=35 // pred_region
          %s206 = sand.u32 %s81, 1
          %s207 = scalar_lea.sflag [#allocation7], %s206
          %s208 = sand.u32 %s81, 1
          %s209 = smul.addr %s208, 8
          %s210 = scalar_lea.vmem [#allocation8], %s209
          %211 = dma.done %s207, 128
        $region40: #{tpu_custom_call.1} parent=35 // pred_fallthru
          _
      $region36: #{tpu_custom_call.1} parent=5 // pred_fallthru
        _
    $region6: #{tpu_custom_call.1} parent=1 // loop_footer
      %s27 = sadd.s32 1, %s23
    $region7: #{tpu_custom_call.1} parent=1 // loop_footer_branch
      %22 = sbr.rel target = $region3
    $region8: #{tpu_custom_call.1} parent=1 // loop_exit
      _
    %212 = vsyncpa [#allocation6], 1
    %s213 = scalar_lea.sflag [#allocation6], 1
    %214 = vsyncpa %s213, 1
    %215 = vsyncpa [#allocation7], 1
    %s216 = scalar_lea.sflag [#allocation7], 1
    %217 = vsyncpa %s216, 1

</llo_original>
